<compile_context>
chip_gen: v7x
topology: tpu7x:2x2x1
jax: 0.10.0
libtpu: 0.0.40
codegen_flags: <defaults>
</compile_context>

<pallas_src>
import jax
import jax.numpy as jnp
from jax.experimental import pallas as pl
from jax.experimental.pallas import tpu as pltpu


def se_kernel(x_ref, w1t_ref, w2t_ref, o_ref):
    # x_ref/o_ref: (B_blk, C, HW) in the input dtype
    # w1t_ref:     (C, C_red) f32, pre-scaled by 1/HW (mean folded in), pre-transposed
    # w2t_ref:     (C_red, C) f32, pre-transposed

    # Squeeze: global sum over the spatial (lane) axis, accumulated in f32.
    # Upcast happens only inside the reduce — no full-tile f32 temp.
    pooled = jnp.sum(x_ref[...], axis=-1, dtype=jnp.float32)            # (B_blk, C)

    # Excite: tiny matvecs on the MXU (otherwise 100% idle in this kernel).
    h = jnp.dot(pooled, w1t_ref[...], preferred_element_type=jnp.float32)   # (B_blk, C_red)
    h = jnp.maximum(h, 0.0)
    s = jnp.dot(h, w2t_ref[...], preferred_element_type=jnp.float32)        # (B_blk, C)
    s = jax.nn.sigmoid(s)                                                   # EUP slot

    # Scale: single fused multiply + store in the input dtype.
    gate = s.astype(o_ref.dtype)
    o_ref[...] = x_ref[...] * gate[:, :, None]


def _tpu_params():
    """(vmem_capacity_bytes, num_tensorcores) with a safe fallback."""
    vmem_cap = 64 << 20   # conservative default (v7x per-TC VMEM)
    num_tc = 1            # conservative default (correct everywhere)
    try:
        info = pltpu.get_tpu_info()
        vmem_cap = int(getattr(info, "vmem_capacity_bytes", vmem_cap))
        # v7x is the only generation with 64 MiB per-TC VMEM; it has 2 TCs/chip.
        num_tc = 2 if vmem_cap <= (64 << 20) else 1
    except Exception:
        pass
    return vmem_cap, num_tc


def se_module_forward(x_nchw, w1, w2, *, donate_x=False):
    """x_nchw: (N, C, H, W); w1: (C_red, C); w2: (C, C_red). Returns (N, C, H, W)."""
    N, C, H, W = x_nchw.shape
    C_red = w1.shape[0]
    HW = H * W
    dtype = x_nchw.dtype
    itemsize = jnp.dtype(dtype).itemsize

    # No padding / slicing: BlockSpec last dims equal the full array dims, so
    # an unaligned HW just costs masked tail stores (kernel is HBM-DMA bound).
    x_flat = x_nchw.reshape(N, C, HW)

    # Fold the 1/HW mean normalization into the (tiny) first weight matrix,
    # pre-transpose both weights so the kernel does plain row-major matmuls,
    # and keep the excite path in f32 regardless of the activation dtype.
    w1t = (w1.astype(jnp.float32) * (1.0 / HW)).T       # (C, C_red)
    w2t = w2.astype(jnp.float32).T                       # (C_red, C)
    weight_bytes = (w1t.size + w2t.size) * 4

    # --- Generation-aware tiling ------------------------------------------
    vmem_cap, num_tc = _tpu_params()
    vmem_budget = int(vmem_cap * 0.75)                   # headroom for Mosaic scratch
    # Bigger blocks on 1-TC chips (v5e/v6e, big VMEM); moderate on v7x.
    target_block_bytes = (8 << 20) if num_tc == 1 else (4 << 20)

    per_elem_bytes = C * HW * itemsize
    # Clamp so double-buffered in + out (~4x block) plus weights fits the budget.
    max_b_vmem = max(1, (vmem_budget - 4 * weight_bytes - (1 << 20)) // (4 * per_elem_bytes))
    b_blk = int(min(N, max(1, target_block_bytes // per_elem_bytes), max_b_vmem))
    if num_tc >= 2:
        if N >= 2 * num_tc:
            # >= 2 grid steps per core so double-buffering has work to overlap.
            b_blk = min(b_blk, pl.cdiv(N, 2 * num_tc))
        elif N >= num_tc:
            b_blk = min(b_blk, pl.cdiv(N, num_tc))
    b_blk = max(1, b_blk)
    grid = (pl.cdiv(N, b_blk),)
    block_bytes = b_blk * per_elem_bytes

    vmem_limit = int(min(vmem_budget,
                         max(32 << 20, 4 * block_bytes + 4 * weight_bytes + (2 << 20))))

    # Pure-bandwidth op: tell XLA so it schedules surrounding ops sensibly.
    cost = pl.CostEstimate(
        flops=int(3 * N * C * HW + 4 * N * C * C_red),
        transcendentals=int(N * C),
        bytes_accessed=int(2 * N * C * HW * itemsize + weight_bytes),
    )

    call_kwargs = {}
    if donate_x:
        # Aliasing halves peak HBM footprint (not traffic) when x is donated.
        call_kwargs["input_output_aliases"] = {0: 0}

    out_flat = pl.pallas_call(
        se_kernel,
        out_shape=jax.ShapeDtypeStruct((N, C, HW), dtype),
        grid_spec=pltpu.PrefetchScalarGridSpec(
            num_scalar_prefetch=0,
            grid=grid,
            in_specs=[
                pl.BlockSpec((b_blk, C, HW), lambda n: (n, 0, 0)),
                pl.BlockSpec((C, C_red), lambda n: (0, 0)),
                pl.BlockSpec((C_red, C), lambda n: (0, 0)),
            ],
            out_specs=pl.BlockSpec((b_blk, C, HW), lambda n: (n, 0, 0)),
        ),
        compiler_params=pltpu.CompilerParams(
            dimension_semantics=("parallel",),
            vmem_limit_bytes=vmem_limit,
        ),
        cost_estimate=cost,
        **call_kwargs,
    )(x_flat, w1t, w2t)

    return out_flat.reshape(N, C, H, W)


def se_module_ref(x_nchw, w1, w2):
    pooled = jnp.mean(x_nchw.astype(jnp.float32), axis=(2, 3))          # (N, C)
    h = jnp.maximum(pooled @ w1.astype(jnp.float32).T, 0.0)             # (N, C_red)
    s = jax.nn.sigmoid(h @ w2.astype(jnp.float32).T)                    # (N, C)
    return x_nchw * s[:, :, None, None].astype(x_nchw.dtype)


if __name__ == "__main__":
    # Small shapes consistent with the module: channels=16, reduction=4.
    N, C = 2, 16
    reduction = 4
    C_red = C // reduction

    key = jax.random.PRNGKey(0)
    kx, k1, k2, kx2 = jax.random.split(key, 4)

    # Deterministic Conv2d(1x1, bias=False) weights (Kaiming-ish scale).
    w1 = jax.random.normal(k1, (C_red, C), dtype=jnp.float32) * (1.0 / jnp.sqrt(C))
    w2 = jax.random.normal(k2, (C, C_red), dtype=jnp.float32) * (1.0 / jnp.sqrt(C_red))

    # Case 1: lane-aligned spatial size (HW = 256).
    x = jax.random.normal(kx, (N, C, 16, 16), dtype=jnp.float32)
    out = jax.block_until_ready(se_module_forward(x, w1, w2))
    ref = se_module_ref(x, w1, w2)
    assert out.shape == x.shape
    assert jnp.allclose(out, ref, atol=1e-5, rtol=1e-5), "mismatch (aligned HW)"

    # Case 2: non-128-multiple spatial size (HW = 196, no wrapper pad/slice).
    x2 = jax.random.normal(kx2, (N, C, 14, 14), dtype=jnp.float32)
    out2 = jax.block_until_ready(se_module_forward(x2, w1, w2))
    ref2 = se_module_ref(x2, w1, w2)
    assert out2.shape == x2.shape
    assert jnp.allclose(out2, ref2, atol=1e-5, rtol=1e-5), "mismatch (unaligned HW)"

    print("KERNEL_OK")
</pallas_src>

<mosaic_0001>
module attributes {stable_mosaic.version = 11 : i64} {
  func.func @se_kernel(%arg0: i32, %arg1: memref<2x16x256xf32, #tpu.memory_space<vmem>>, %arg2: memref<16x4xf32, #tpu.memory_space<vmem>>, %arg3: memref<4x16xf32, #tpu.memory_space<vmem>>, %arg4: memref<2x16x256xf32, #tpu.memory_space<vmem>>) attributes {dimension_semantics = [#tpu.dimension_semantics<parallel>], iteration_bounds = array<i64: 1>, scalar_prefetch = 0 : i64, scratch_operands = 0 : i64, tpu.core_type = #tpu.core_type<tc>, window_params = [{transform_indices = @transform_0, window_bounds = array<i64: 2, 16, 256>}, {pipeline_mode = #tpu.pipeline_mode<synchronous>, transform_indices = @transform_1, window_bounds = array<i64: 16, 4>}, {pipeline_mode = #tpu.pipeline_mode<synchronous>, transform_indices = @transform_2, window_bounds = array<i64: 4, 16>}, {transform_indices = @transform_3, window_bounds = array<i64: 2, 16, 256>}]} {
    %c0 = arith.constant 0 : index
    %c0_0 = arith.constant 0 : index
    %c0_1 = arith.constant 0 : index
    %0 = vector.load %arg1[%c0, %c0_0, %c0_1] : memref<2x16x256xf32, #tpu.memory_space<vmem>>, vector<2x16x256xf32>
    %cst = arith.constant dense<0.000000e+00> : vector<2x16xf32>
    %1 = vector.multi_reduction <add>, %0, %cst [2] : vector<2x16x256xf32> to vector<2x16xf32>
    %c0_2 = arith.constant 0 : index
    %c0_3 = arith.constant 0 : index
    %2 = vector.load %arg2[%c0_2, %c0_3] : memref<16x4xf32, #tpu.memory_space<vmem>>, vector<16x4xf32>
    %cst_4 = arith.constant dense<0.000000e+00> : vector<2x4xf32>
    %3 = tpu.matmul %1, %2, %cst_4 {dimension_numbers = #tpu.dot_dimension_numbers<[1], [0], [0], [1], [0, 0, 1, 1], [], []>} : vector<2x16xf32>, vector<16x4xf32>, vector<2x4xf32> -> vector<2x4xf32>
    %cst_5 = arith.constant 0.000000e+00 : f32
    %4 = vector.broadcast %cst_5 : f32 to vector<2x4xf32>
    %5 = arith.maximumf %3, %4 : vector<2x4xf32>
    %c0_6 = arith.constant 0 : index
    %c0_7 = arith.constant 0 : index
    %6 = vector.load %arg3[%c0_6, %c0_7] : memref<4x16xf32, #tpu.memory_space<vmem>>, vector<4x16xf32>
    %cst_8 = arith.constant dense<0.000000e+00> : vector<2x16xf32>
    %7 = tpu.matmul %5, %6, %cst_8 {dimension_numbers = #tpu.dot_dimension_numbers<[1], [0], [0], [1], [0, 0, 1, 1], [], []>} : vector<2x4xf32>, vector<4x16xf32>, vector<2x16xf32> -> vector<2x16xf32>
    %8 = arith.negf %7 : vector<2x16xf32>
    %9 = math.exp %8 : vector<2x16xf32>
    %cst_9 = arith.constant 1.000000e+00 : f32
    %10 = vector.broadcast %cst_9 : f32 to vector<2x16xf32>
    %11 = arith.addf %10, %9 : vector<2x16xf32>
    %12 = arith.divf %10, %11 : vector<2x16xf32>
    %c0_10 = arith.constant 0 : index
    %c0_11 = arith.constant 0 : index
    %c0_12 = arith.constant 0 : index
    %13 = vector.load %arg1[%c0_10, %c0_11, %c0_12] : memref<2x16x256xf32, #tpu.memory_space<vmem>>, vector<2x16x256xf32>
    %14 = vector.shape_cast %12 : vector<2x16xf32> to vector<2x16x1xf32>
    %15 = vector.broadcast %14 : vector<2x16x1xf32> to vector<2x16x256xf32>
    %16 = arith.mulf %13, %15 : vector<2x16x256xf32>
    %c0_13 = arith.constant 0 : index
    %c0_14 = arith.constant 0 : index
    %c0_15 = arith.constant 0 : index
    %17 = vector.load %arg4[%c0_13, %c0_14, %c0_15] : memref<2x16x256xf32, #tpu.memory_space<vmem>>, vector<2x16x256xf32>
    tpu.vector_store %arg4[%c0_13, %c0_14, %c0_15], %16 {strides = array<i32>} : memref<2x16x256xf32, #tpu.memory_space<vmem>>, vector<2x16x256xf32>,
    return
  }
  func.func @transform_0(%arg0: i32) -> (i32, i32, i32) {
    %c0_i32 = arith.constant 0 : i32
    %c0_i32_0 = arith.constant 0 : i32
    %c0_i32_1 = arith.constant 0 : i32
    return %arg0, %c0_i32, %c0_i32_0 : i32, i32, i32
  }
  func.func @transform_1(%arg0: i32) -> (i32, i32) {
    %c0_i32 = arith.constant 0 : i32
    %c0_i32_0 = arith.constant 0 : i32
    %c0_i32_1 = arith.constant 0 : i32
    return %c0_i32, %c0_i32_0 : i32, i32
  }
  func.func @transform_2(%arg0: i32) -> (i32, i32) {
    %c0_i32 = arith.constant 0 : i32
    %c0_i32_0 = arith.constant 0 : i32
    %c0_i32_1 = arith.constant 0 : i32
    return %c0_i32, %c0_i32_0 : i32, i32
  }
  func.func @transform_3(%arg0: i32) -> (i32, i32, i32) {
    %c0_i32 = arith.constant 0 : i32
    %c0_i32_0 = arith.constant 0 : i32
    %c0_i32_1 = arith.constant 0 : i32
    return %arg0, %c0_i32, %c0_i32_0 : i32, i32, i32
  }
}

</mosaic_0001>

<llo_original>
// kernel: tpu_custom_call.1
$region0: #{tpu_custom_call.1}
  #allocation0 [shape = 'u32[]', space=smem, size = 0x4, offset = 0x4, fixed_abs, tag = 'smem constant byte address 0x4 - core index']
  #allocation1 [shape = 'u32[144,128]{1,0:T(1,128)}', space=vmem, size = 0x12000, scoped, tag = 'internal scratch']
  %s0 = inlined_call_operand.hbm [shape: f32[2,16,256], index: 0, kind: input, shape index: {}]
  %s1 = inlined_call_operand.vmem [shape: f32[16,4], index: 1, kind: input, shape index: {}]
  %s2 = inlined_call_operand.vmem [shape: f32[4,16], index: 2, kind: input, shape index: {}]
  %s3 = inlined_call_operand.hbm [shape: f32[2,16,256], index: 3, kind: output, shape index: {}]
  %s4 = sld [smem:[#allocation0]]
  $region26: #{tpu_custom_call.1} parent=0
    _
  %s6 = ssub.s32 1, %s4
  %s7 = scalar_select 0, %s6, %s4
  $region1: #{tpu_custom_call.1} parent=0
    #allocation2 [shape = 'u8[32768]{0}', space=vmem, size = 0x8000, scoped, tag = 'input window, operand 0, single buffered']
    #allocation3 [shape = 's32[1]{0}', space=sflag, size = 0x4, scoped, tag = 'scoped memory for tpu_custom_call.1']
    #allocation4 [shape = 's32[1]{0}', space=sflag, size = 0x4, scoped, tag = 'scoped memory for tpu_custom_call.1']
    #allocation5 [shape = 'u8[32768]{0}', space=vmem, size = 0x8000, scoped, tag = 'output window, operand 0, single buffered']
    %8 = vsyncpa [#allocation3], 0
    %9 = vsyncpa [#allocation4], 0
    // Predicated region
    $region2: #{tpu_custom_call.1} parent=1 // pred_check
      _
    $region3: #{tpu_custom_call.1} parent=1 // pred_check_branch
      %11 = sbr.rel (0) target = $region5
    $region4: #{tpu_custom_call.1} parent=1 // pred_region
      %s13 = ssub.s32 1024, 1024
      %14 = vsyncadd [#allocation3], %s13
      %s15 = sshll.u32 [#allocation2], 4
      %s16 = int_to_ptr.vmem [resolvable:$true] %s15
      %21 = dma.hbm_to_vmem [thread:$0]  %s0, 1024, %s16, [#allocation3], 256, 256, 16
    $region5: #{tpu_custom_call.1} parent=1 // pred_fallthru
      _
    // Predicated region
    $region6: #{tpu_custom_call.1} parent=1 // pred_check
      _
    $region7: #{tpu_custom_call.1} parent=1 // pred_check_branch
      %23 = sbr.rel (0) target = $region9
    $region8: #{tpu_custom_call.1} parent=1 // pred_region
      _
    $region9: #{tpu_custom_call.1} parent=1 // pred_fallthru
      _
    // Predicated region
    $region10: #{tpu_custom_call.1} parent=1 // pred_check
      _
    $region11: #{tpu_custom_call.1} parent=1 // pred_check_branch
      %25 = sbr.rel (0) target = $region13
    $region12: #{tpu_custom_call.1} parent=1 // pred_region
      _
    $region13: #{tpu_custom_call.1} parent=1 // pred_fallthru
      _
    // Predicated region
    $region14: #{tpu_custom_call.1} parent=1 // pred_check
      _
    $region15: #{tpu_custom_call.1} parent=1 // pred_check_branch
      %27 = sbr.rel (0) target = $region17
    $region16: #{tpu_custom_call.1} parent=1 // pred_region
      %28 = dma.done [#allocation3], 1024
    $region17: #{tpu_custom_call.1} parent=1 // pred_fallthru
      _
    %v29 = vld [vmem:[#allocation2] sm:$0xff]
    %v30 = vld [vmem:[#allocation2 + $0x8] sm:$0xff]
    %v31 = vld [vmem:[#allocation2 + $0x10] sm:$0xff]
    %v32 = vld [vmem:[#allocation2 + $0x18] sm:$0xff]
    %v33 = vld [vmem:[#allocation2 + $0x20] sm:$0xff]
    %v34 = vld [vmem:[#allocation2 + $0x28] sm:$0xff]
    %v35 = vld [vmem:[#allocation2 + $0x30] sm:$0xff]
    %v36 = vld [vmem:[#allocation2 + $0x38] sm:$0xff]
    %v37 = vadd.f32 %v29, %v30
    %38 = vadd.xlane.f32.xlu0 %v37
    %v39 = vpop.xlane.xlu0 %38
    %v40 = vadd.f32 %v31, %v32
    %41 = vadd.xlane.f32.xlu0 %v40
    %v42 = vpop.xlane.xlu0 %41
    %v43 = vadd.f32 %v33, %v34
    %44 = vadd.xlane.f32.xlu0 %v43
    %v45 = vpop.xlane.xlu0 %44
    %v46 = vadd.f32 %v35, %v36
    %47 = vadd.xlane.f32.xlu0 %v46
    %v48 = vpop.xlane.xlu0 %47
    %v49 = vld [vmem:[%s1] sm:$0xff]
    %v50 = vld [vmem:[%s1 + $0x8] sm:$0xff]
    %v55 = vlaneseq
    %v56 = vand.u32 %v55, 127
    %v57 = vlaneseq
    %v58 = vshrl.u32 %v57, 7
    %v59 = vsub.s32 %v56, %v58
    %v60 = vrot.slane %v39, %v59
    %v61 = vadd.s32 %v56, 4294967288
    %v62 = vlaneseq
    %v63 = vshrl.u32 %v62, 7
    %v64 = vsub.s32 %v61, %v63
    %v65 = vrot.slane %v42, %v64
    %vm66 = vcmask 130112
    %v67 = vsel %vm66, %v65, %v60
    %v68 = vlaneseq
    %v69 = vshrl.u32 %v68, 7
    %v70 = vsub.s32 %v56, %v69
    %v71 = vrot.slane %v45, %v70
    %v72 = vlaneseq
    %v73 = vshrl.u32 %v72, 7
    %v74 = vsub.s32 %v61, %v73
    %v75 = vrot.slane %v48, %v74
    %v76 = vsel %vm66, %v75, %v71
    %vm77 = vcmask 1041409
    %v78 = vsel %vm77, %v76, %v67
    %vm79 = vcmask 130048
    %v80 = vsel %vm79, %v78, 0
    %82 = vmatprep.subr.mxu0 0.0
    %83 = vmatpush1.msra.mxu0 %v49
    %84 = vmatprep.subr.mxu0 0.0
    %85 = vmatpush1.msra.mxu0 %v50
    %86 = vmatprep.subr.mxu0 0.0
    %87 = vmatpush1.msra.mxu0 0.0
    %88 = vmatprep.subr.mxu0 0.0
    %89 = vmatpush1.msra.mxu0 0.0
    %90 = vmatprep.subr.mxu0 0.0
    %91 = vmatpush1.msra.mxu0 0.0
    %92 = vmatprep.subr.mxu0 0.0
    %93 = vmatpush1.msra.mxu0 0.0
    %94 = vmatprep.subr.mxu0 0.0
    %95 = vmatpush1.msra.mxu0 0.0
    %96 = vmatprep.subr.mxu0 0.0
    %97 = vmatpush1.msra.mxu0 0.0
    %98 = vmatprep.subr.mxu0 0.0
    %99 = vmatpush1.msra.mxu0 0.0
    %100 = vmatprep.subr.mxu0 0.0
    %101 = vmatpush1.msra.mxu0 0.0
    %102 = vmatprep.subr.mxu0 0.0
    %103 = vmatpush1.msra.mxu0 0.0
    %104 = vmatprep.subr.mxu0 0.0
    %105 = vmatpush1.msra.mxu0 0.0
    %106 = vmatprep.subr.mxu0 0.0
    %107 = vmatpush1.msra.mxu0 0.0
    %108 = vmatprep.subr.mxu0 0.0
    %109 = vmatpush1.msra.mxu0 0.0
    %110 = vmatprep.subr.mxu0 0.0
    %111 = vmatpush1.msra.mxu0 0.0
    %112 = vmatprep.subr.mxu0 0.0
    %113 = vmatpush1.msra.mxu0 0.0
    %114 = vmatprep.subr.mxu0 0.0
    %115 = vmatpush1.msra.mxu0 0.0
    %116 = vmatprep.subr.mxu0 0.0
    %117 = vmatpush1.msra.mxu0 0.0
    %118 = vmatprep.subr.mxu0 0.0
    %119 = vmatpush1.msra.mxu0 0.0
    %120 = vmatprep.subr.mxu0 0.0
    %121 = vmatpush1.msra.mxu0 0.0
    %122 = vmatprep.subr.mxu0 0.0
    %123 = vmatpush1.msra.mxu0 0.0
    %124 = vmatprep.subr.mxu0 0.0
    %125 = vmatpush1.msra.mxu0 0.0
    %126 = vmatprep.subr.mxu0 0.0
    %127 = vmatpush1.msra.mxu0 0.0
    %128 = vmatprep.subr.mxu0 0.0
    %129 = vmatpush1.msra.mxu0 0.0
    %130 = vmatprep.subr.mxu0 0.0
    %131 = vmatpush1.msra.mxu0 0.0
    %132 = vmatprep.subr.mxu0 0.0
    %133 = vmatpush1.msra.mxu0 0.0
    %134 = vmatprep.subr.mxu0 0.0
    %135 = vmatpush1.msra.mxu0 0.0
    %136 = vmatprep.subr.mxu0 0.0
    %137 = vmatpush1.msra.mxu0 0.0
    %138 = vmatprep.subr.mxu0 0.0
    %139 = vmatpush1.msra.mxu0 0.0
    %140 = vmatprep.subr.mxu0 0.0
    %141 = vmatpush1.msra.mxu0 0.0
    %142 = vmatprep.subr.mxu0 0.0
    %143 = vmatpush1.msra.mxu0 0.0
    %144 = vmatprep.subr.mxu0 0.0
    %145 = vmatpush1.msra.mxu0 0.0
    %146 = vmatprep.mubr.f32.mxu0 0.0
    %147 = vmatmul.mubr.f32.gmra.mrb[0].mxu0 %v80
    %v148 = vpop.f32.mrb[0].mxu0
    %v149 = vadd.f32 0.0, %v148
    %v150 = vpop.f32.mrb[0].mxu0
    %151 = vdwg.mxu0
    %v152 = vmax.f32 %v149, 0.0
    %v153 = vld [vmem:[%s2] sm:$0xf]
    %vm154 = vcmask 31744
    %v156 = vsel %vm154, %v152, 0
    %vm158 = vcmask 1043456
    %v160 = vsel %vm158, %v153, 0
    %162 = vmatprep.subr.mxu0 0.0
    %163 = vmatpush1.msra.mxu0 %v160
    %164 = vmatprep.subr.mxu0 0.0
    %165 = vmatpush1.msra.mxu0 0.0
    %166 = vmatprep.subr.mxu0 0.0
    %167 = vmatpush1.msra.mxu0 0.0
    %168 = vmatprep.subr.mxu0 0.0
    %169 = vmatpush1.msra.mxu0 0.0
    %170 = vmatprep.subr.mxu0 0.0
    %171 = vmatpush1.msra.mxu0 0.0
    %172 = vmatprep.subr.mxu0 0.0
    %173 = vmatpush1.msra.mxu0 0.0
    %174 = vmatprep.subr.mxu0 0.0
    %175 = vmatpush1.msra.mxu0 0.0
    %176 = vmatprep.subr.mxu0 0.0
    %177 = vmatpush1.msra.mxu0 0.0
    %178 = vmatprep.subr.mxu0 0.0
    %179 = vmatpush1.msra.mxu0 0.0
    %180 = vmatprep.subr.mxu0 0.0
    %181 = vmatpush1.msra.mxu0 0.0
    %182 = vmatprep.subr.mxu0 0.0
    %183 = vmatpush1.msra.mxu0 0.0
    %184 = vmatprep.subr.mxu0 0.0
    %185 = vmatpush1.msra.mxu0 0.0
    %186 = vmatprep.subr.mxu0 0.0
    %187 = vmatpush1.msra.mxu0 0.0
    %188 = vmatprep.subr.mxu0 0.0
    %189 = vmatpush1.msra.mxu0 0.0
    %190 = vmatprep.subr.mxu0 0.0
    %191 = vmatpush1.msra.mxu0 0.0
    %192 = vmatprep.subr.mxu0 0.0
    %193 = vmatpush1.msra.mxu0 0.0
    %194 = vmatprep.subr.mxu0 0.0
    %195 = vmatpush1.msra.mxu0 0.0
    %196 = vmatprep.subr.mxu0 0.0
    %197 = vmatpush1.msra.mxu0 0.0
    %198 = vmatprep.subr.mxu0 0.0
    %199 = vmatpush1.msra.mxu0 0.0
    %200 = vmatprep.subr.mxu0 0.0
    %201 = vmatpush1.msra.mxu0 0.0
    %202 = vmatprep.subr.mxu0 0.0
    %203 = vmatpush1.msra.mxu0 0.0
    %204 = vmatprep.subr.mxu0 0.0
    %205 = vmatpush1.msra.mxu0 0.0
    %206 = vmatprep.subr.mxu0 0.0
    %207 = vmatpush1.msra.mxu0 0.0
    %208 = vmatprep.subr.mxu0 0.0
    %209 = vmatpush1.msra.mxu0 0.0
    %210 = vmatprep.subr.mxu0 0.0
    %211 = vmatpush1.msra.mxu0 0.0
    %212 = vmatprep.subr.mxu0 0.0
    %213 = vmatpush1.msra.mxu0 0.0
    %214 = vmatprep.subr.mxu0 0.0
    %215 = vmatpush1.msra.mxu0 0.0
    %216 = vmatprep.subr.mxu0 0.0
    %217 = vmatpush1.msra.mxu0 0.0
    %218 = vmatprep.subr.mxu0 0.0
    %219 = vmatpush1.msra.mxu0 0.0
    %220 = vmatprep.subr.mxu0 0.0
    %221 = vmatpush1.msra.mxu0 0.0
    %222 = vmatprep.subr.mxu0 0.0
    %223 = vmatpush1.msra.mxu0 0.0
    %224 = vmatprep.subr.mxu0 0.0
    %225 = vmatpush1.msra.mxu0 0.0
    %226 = vmatprep.mubr.f32.mxu0 0.0
    %227 = vmatmul.mubr.f32.gmra.mrb[0].mxu0 %v156
    %v228 = vpop.f32.mrb[0].mxu0
    %v229 = vadd.f32 0.0, %v228
    %v230 = vpop.f32.mrb[0].mxu0
    %231 = vdwg.mxu0
    %v232 = vxor.u32 %v229, 2147483648
    %v233 = vmul.f32 %v232, 1.442695
    %v234 = vpow.pop %v233
    %v235 = vadd.f32 %v234, 1.0
    %v236 = vrcp.pop %v235
    %v237 = vmul.f32 1.0, %v236
    %v238 = vlaneseq
    %v239 = vshrl.u32 %v238, 7
    %v240 = vsub.s32 0, %v239
    %v241 = vrot.slane %v237, %v240
    %243 = vbcast.lane.b32.xlu0 %v241, 256
    %v244 = vpop.permute.xlu0 %243
    %s246 = sor.u32 256, 8
    %247 = vbcast.lane.b32.xlu0 %v241, %s246
    %v248 = vpop.permute.xlu0 %247
    %v249 = vlaneseq
    %v250 = vshrl.u32 %v249, 7
    %v251 = vsub.s32 1, %v250
    %v252 = vrot.slane %v237, %v251
    %254 = vbcast.lane.b32.xlu0 %v252, 256
    %v255 = vpop.permute.xlu0 %254
    %s257 = sor.u32 256, 8
    %258 = vbcast.lane.b32.xlu0 %v252, %s257
    %v259 = vpop.permute.xlu0 %258
    %v260 = vmul.f32 %v29, %v244
    %v261 = vmul.f32 %v30, %v244
    %v262 = vmul.f32 %v31, %v248
    %v263 = vmul.f32 %v32, %v248
    %v264 = vmul.f32 %v33, %v255
    %v265 = vmul.f32 %v34, %v255
    %v266 = vmul.f32 %v35, %v259
    %v267 = vmul.f32 %v36, %v259
    %268 = vst [vmem:[#allocation5] sm:$0xff] %v260
    %269 = vst [vmem:[#allocation5 + $0x8] sm:$0xff] %v261
    %270 = vst [vmem:[#allocation5 + $0x10] sm:$0xff] %v262
    %271 = vst [vmem:[#allocation5 + $0x18] sm:$0xff] %v263
    %272 = vst [vmem:[#allocation5 + $0x20] sm:$0xff] %v264
    %273 = vst [vmem:[#allocation5 + $0x28] sm:$0xff] %v265
    %274 = vst [vmem:[#allocation5 + $0x30] sm:$0xff] %v266
    %275 = vst [vmem:[#allocation5 + $0x38] sm:$0xff] %v267
    // Predicated region
    $region18: #{tpu_custom_call.1} parent=1 // pred_check
      _
    $region19: #{tpu_custom_call.1} parent=1 // pred_check_branch
      %277 = sbr.rel (0) target = $region21
    $region20: #{tpu_custom_call.1} parent=1 // pred_region
      %s279 = ssub.s32 1024, 1024
      %280 = vsyncadd [#allocation4], %s279
      %s281 = sshll.u32 [#allocation5], 4
      %s282 = int_to_ptr.vmem [resolvable:$true] %s281
      %287 = dma.vmem_to_hbm [thread:$0]  %s282, 1024, %s3, [#allocation4], 256, 256, 16
    $region21: #{tpu_custom_call.1} parent=1 // pred_fallthru
      _
    // Predicated region
    $region22: #{tpu_custom_call.1} parent=1 // pred_check
      _
    $region23: #{tpu_custom_call.1} parent=1 // pred_check_branch
      %289 = sbr.rel (0) target = $region25
    $region24: #{tpu_custom_call.1} parent=1 // pred_region
      %290 = dma.done [#allocation4], 1024
    $region25: #{tpu_custom_call.1} parent=1 // pred_fallthru
      _
    %291 = vsyncpa [#allocation3], 1
    %292 = vsyncpa [#allocation4], 1

</llo_original>
